<compile_context>
chip_gen: v6e
topology: v6e:2x2x1
jax: 0.10.0
libtpu: 0.0.40
codegen_flags: <defaults>
</compile_context>

<pallas_src>
import jax
import jax.numpy as jnp
from jax.experimental import pallas as pl
from jax.experimental.pallas import tpu as pltpu


def _linear_kernel(w_ref, b_ref, xt_ref, ot_ref):
    # o^T tile = W @ x^T tile + b, accumulated in f32 on the MXU.
    acc = jnp.dot(w_ref[...], xt_ref[...], preferred_element_type=jnp.float32)
    ot_ref[...] = (acc + b_ref[...]).astype(ot_ref.dtype)  # (out,1) bcast over lanes


def single_layer_decoder(x, weight, bias, *, tn_max=2048):
    """Pallas forward of SingleLayerDecoder.

    Args:
      x:      (N, input_dim) float32
      weight: (output_dim, input_dim) float32  (PyTorch nn.Linear convention)
      bias:   (output_dim,) float32
    Returns:
      (N, output_dim) float32
    """
    n, input_dim = x.shape
    output_dim = weight.shape[0]

    # Tile the batch axis on lanes: tiles must be multiples of 128.
    lane = 128
    tn = min(tn_max, ((n + lane - 1) // lane) * lane)
    padded_n = ((n + tn - 1) // tn) * tn

    # Pad rows with zeros (padded columns compute W@0 + b; sliced off below),
    # then transpose so the batch axis is the last (lane) dim.
    xt = jnp.pad(x, ((0, padded_n - n), (0, 0))).T        # (input_dim, padded_n)
    b2 = bias.reshape(output_dim, 1)                      # (output_dim, 1)

    grid = (padded_n // tn,)

    cost = pl.CostEstimate(
        flops=2 * n * input_dim * output_dim,
        transcendentals=0,
        bytes_accessed=4 * (n * input_dim + n * output_dim
                            + output_dim * input_dim + output_dim),
    )

    out_t = pl.pallas_call(
        _linear_kernel,
        out_shape=jax.ShapeDtypeStruct((output_dim, padded_n), x.dtype),
        grid=grid,
        in_specs=[
            # Weight and bias: full-extent blocks, resident across all steps.
            pl.BlockSpec((output_dim, input_dim), lambda i: (0, 0)),
            pl.BlockSpec((output_dim, 1), lambda i: (0, 0)),
            # x^T: one lane-dense batch tile per grid step.
            pl.BlockSpec((input_dim, tn), lambda i: (0, i)),
        ],
        # Output: lane-dense (output_dim, tn) tile per step.
        out_specs=pl.BlockSpec((output_dim, tn), lambda i: (0, i)),
        compiler_params=pltpu.CompilerParams(
            dimension_semantics=("parallel",)),
        cost_estimate=cost,
    )(weight, b2, xt)

    # Drop padding, restore (N, output_dim) orientation (cheap: (2, N) transpose).
    return out_t[:, :n].T


def _reference(x, weight, bias):
    return x @ weight.T + bias[None, :]


if __name__ == "__main__":
    key = jax.random.PRNGKey(0)
    k_x, k_w, k_b = jax.random.split(key, 3)

    batch = 8
    input_dim = 32     # latent embedding dimension
    output_dim = 2     # x/y velocity, as in the module default

    # Deterministic parameter init mimicking nn.Linear default:
    # U(-1/sqrt(input_dim), +1/sqrt(input_dim))
    bound = 1.0 / jnp.sqrt(jnp.float32(input_dim))
    weight = jax.random.uniform(
        k_w, (output_dim, input_dim), jnp.float32, minval=-bound, maxval=bound)
    bias = jax.random.uniform(
        k_b, (output_dim,), jnp.float32, minval=-bound, maxval=bound)

    x = jax.random.normal(k_x, (batch, input_dim), jnp.float32)

    y = single_layer_decoder(x, weight, bias)
    y = jax.block_until_ready(y)

    y_ref = _reference(x, weight, bias)
    assert y.shape == (batch, output_dim)
    assert jnp.allclose(y, y_ref, atol=1e-5, rtol=1e-5), "mismatch vs reference"

    print("KERNEL_OK")
</pallas_src>

<mosaic_0001>
module attributes {stable_mosaic.version = 11 : i64} {
  func.func @_linear_kernel(%arg0: i32, %arg1: memref<2x32xf32, #tpu.memory_space<vmem>>, %arg2: memref<2x1xf32, #tpu.memory_space<vmem>>, %arg3: memref<32x128xf32, #tpu.memory_space<vmem>>, %arg4: memref<2x128xf32, #tpu.memory_space<vmem>>) attributes {dimension_semantics = [#tpu.dimension_semantics<parallel>], iteration_bounds = array<i64: 1>, scalar_prefetch = 0 : i64, scratch_operands = 0 : i64, tpu.core_type = #tpu.core_type<tc>, window_params = [{pipeline_mode = #tpu.pipeline_mode<synchronous>, transform_indices = @transform_0, window_bounds = array<i64: 2, 32>}, {pipeline_mode = #tpu.pipeline_mode<synchronous>, transform_indices = @transform_1, window_bounds = array<i64: 2, 1>}, {transform_indices = @transform_2, window_bounds = array<i64: 32, 128>}, {transform_indices = @transform_3, window_bounds = array<i64: 2, 128>}]} {
    %c0 = arith.constant 0 : index
    %c0_0 = arith.constant 0 : index
    %0 = vector.load %arg1[%c0, %c0_0] : memref<2x32xf32, #tpu.memory_space<vmem>>, vector<2x32xf32>
    %c0_1 = arith.constant 0 : index
    %c0_2 = arith.constant 0 : index
    %1 = vector.load %arg3[%c0_1, %c0_2] : memref<32x128xf32, #tpu.memory_space<vmem>>, vector<32x128xf32>
    %cst = arith.constant dense<0.000000e+00> : vector<2x128xf32>
    %2 = tpu.matmul %0, %1, %cst {dimension_numbers = #tpu.dot_dimension_numbers<[1], [0], [0], [1], [0, 0, 1, 1], [], []>} : vector<2x32xf32>, vector<32x128xf32>, vector<2x128xf32> -> vector<2x128xf32>
    %c0_3 = arith.constant 0 : index
    %c0_4 = arith.constant 0 : index
    %3 = vector.load %arg2[%c0_3, %c0_4] : memref<2x1xf32, #tpu.memory_space<vmem>>, vector<2x1xf32>
    %4 = vector.broadcast %3 : vector<2x1xf32> to vector<2x128xf32>
    %5 = arith.addf %2, %4 : vector<2x128xf32>
    %c0_5 = arith.constant 0 : index
    %c0_6 = arith.constant 0 : index
    %6 = vector.load %arg4[%c0_5, %c0_6] : memref<2x128xf32, #tpu.memory_space<vmem>>, vector<2x128xf32>
    tpu.vector_store %arg4[%c0_5, %c0_6], %5 {strides = array<i32>} : memref<2x128xf32, #tpu.memory_space<vmem>>, vector<2x128xf32>,
    return
  }
  func.func @transform_0(%arg0: i32) -> (i32, i32) {
    %c0_i32 = arith.constant 0 : i32
    %c0_i32_0 = arith.constant 0 : i32
    %c0_i32_1 = arith.constant 0 : i32
    return %c0_i32, %c0_i32_0 : i32, i32
  }
  func.func @transform_1(%arg0: i32) -> (i32, i32) {
    %c0_i32 = arith.constant 0 : i32
    %c0_i32_0 = arith.constant 0 : i32
    %c0_i32_1 = arith.constant 0 : i32
    return %c0_i32, %c0_i32_0 : i32, i32
  }
  func.func @transform_2(%arg0: i32) -> (i32, i32) {
    %c0_i32 = arith.constant 0 : i32
    %c0_i32_0 = arith.constant 0 : i32
    return %c0_i32, %arg0 : i32, i32
  }
  func.func @transform_3(%arg0: i32) -> (i32, i32) {
    %c0_i32 = arith.constant 0 : i32
    %c0_i32_0 = arith.constant 0 : i32
    return %c0_i32, %arg0 : i32, i32
  }
}

</mosaic_0001>

<llo_original>
// kernel: tpu_custom_call.1
$region0: #{tpu_custom_call.1}
  #allocation0 [shape = 'u32[]', space=smem, size = 0x4, offset = 0x4, fixed_abs, tag = 'smem constant byte address 0x4 - core index']
  #allocation1 [shape = 'u32[144,128]{1,0:T(1,128)}', space=vmem, size = 0x12000, scoped, tag = 'internal scratch']
  %s0 = inlined_call_operand.vmem [shape: f32[2,32], index: 0, kind: input, shape index: {}]
  %s1 = inlined_call_operand.vmem [shape: f32[2,1], index: 1, kind: input, shape index: {}]
  %s2 = inlined_call_operand.hbm [shape: f32[32,128], index: 2, kind: input, shape index: {}]
  %s3 = inlined_call_operand.hbm [shape: f32[2,128], index: 3, kind: output, shape index: {}]
  %s4 = sld [smem:[#allocation0]]
  $region26: #{tpu_custom_call.1} parent=0
    _
  %s6 = ssub.s32 1, %s4
  %s7 = scalar_select 0, %s6, %s4
  $region1: #{tpu_custom_call.1} parent=0
    #allocation2 [shape = 'u8[16384]{0}', space=vmem, size = 0x4000, scoped, tag = 'input window, operand 2, single buffered']
    #allocation3 [shape = 's32[1]{0}', space=sflag, size = 0x4, scoped, tag = 'scoped memory for tpu_custom_call.1']
    #allocation4 [shape = 's32[1]{0}', space=sflag, size = 0x4, scoped, tag = 'scoped memory for tpu_custom_call.1']
    #allocation5 [shape = 'u8[1024]{0}', space=vmem, size = 0x400, scoped, tag = 'output window, operand 0, single buffered']
    %8 = vsyncpa [#allocation3], 0
    %9 = vsyncpa [#allocation4], 0
    // Predicated region
    $region2: #{tpu_custom_call.1} parent=1 // pred_check
      _
    $region3: #{tpu_custom_call.1} parent=1 // pred_check_branch
      %11 = sbr.rel (0) target = $region5
    $region4: #{tpu_custom_call.1} parent=1 // pred_region
      _
    $region5: #{tpu_custom_call.1} parent=1 // pred_fallthru
      _
    // Predicated region
    $region6: #{tpu_custom_call.1} parent=1 // pred_check
      _
    $region7: #{tpu_custom_call.1} parent=1 // pred_check_branch
      %13 = sbr.rel (0) target = $region9
    $region8: #{tpu_custom_call.1} parent=1 // pred_region
      _
    $region9: #{tpu_custom_call.1} parent=1 // pred_fallthru
      _
    // Predicated region
    $region10: #{tpu_custom_call.1} parent=1 // pred_check
      _
    $region11: #{tpu_custom_call.1} parent=1 // pred_check_branch
      %15 = sbr.rel (0) target = $region13
    $region12: #{tpu_custom_call.1} parent=1 // pred_region
      %s17 = ssub.s32 512, 512
      %18 = vsyncadd [#allocation3], %s17
      %s19 = sshll.u32 [#allocation2], 4
      %s20 = int_to_ptr.vmem [resolvable:$true] %s19
      %25 = dma.hbm_to_vmem [thread:$0]  %s2, 512, %s20, [#allocation3], 128, 128, 8
    $region13: #{tpu_custom_call.1} parent=1 // pred_fallthru
      _
    // Predicated region
    $region14: #{tpu_custom_call.1} parent=1 // pred_check
      _
    $region15: #{tpu_custom_call.1} parent=1 // pred_check_branch
      %27 = sbr.rel (0) target = $region17
    $region16: #{tpu_custom_call.1} parent=1 // pred_region
      %28 = dma.done [#allocation3], 512
    $region17: #{tpu_custom_call.1} parent=1 // pred_fallthru
      _
    %v29 = vld [vmem:[%s0] sm:$0x3]
    %v30 = vld [vmem:[#allocation2] sm:$0xff]
    %v31 = vld [vmem:[#allocation2 + $0x8] sm:$0xff]
    %v32 = vld [vmem:[#allocation2 + $0x10] sm:$0xff]
    %v33 = vld [vmem:[#allocation2 + $0x18] sm:$0xff]
    %v34 = vld [vmem:[%s1] sm:$0x3]
    %36 = vset.pattern.permute.xlu0 0
    %37 = vperm.xlu0 %36, %v34
    %v38 = vpop.permute.xlu0 %37
    %vm40 = vcmask 261120
    %v42 = vsel %vm40, %v29, 0
    %44 = vmatprep.subr.mxu0 0.0
    %45 = vmatpush1.msra.mxu0 0.0
    %46 = vmatprep.subr.mxu0 0.0
    %47 = vmatpush1.msra.mxu0 0.0
    %48 = vmatprep.subr.mxu0 0.0
    %49 = vmatpush1.msra.mxu0 0.0
    %50 = vmatprep.subr.mxu0 0.0
    %51 = vmatpush1.msra.mxu0 0.0
    %52 = vmatprep.subr.mxu0 0.0
    %53 = vmatpush1.msra.mxu0 0.0
    %54 = vmatprep.subr.mxu0 0.0
    %55 = vmatpush1.msra.mxu0 0.0
    %56 = vmatprep.subr.mxu0 0.0
    %57 = vmatpush1.msra.mxu0 0.0
    %58 = vmatprep.subr.mxu0 0.0
    %59 = vmatpush1.msra.mxu0 0.0
    %60 = vmatprep.subr.mxu0 0.0
    %61 = vmatpush1.msra.mxu0 0.0
    %62 = vmatprep.subr.mxu0 0.0
    %63 = vmatpush1.msra.mxu0 0.0
    %64 = vmatprep.subr.mxu0 0.0
    %65 = vmatpush1.msra.mxu0 0.0
    %66 = vmatprep.subr.mxu0 0.0
    %67 = vmatpush1.msra.mxu0 0.0
    %68 = vmatprep.subr.mxu0 0.0
    %69 = vmatpush1.msra.mxu0 %v33
    %70 = vmatprep.subr.mxu0 0.0
    %71 = vmatpush1.msra.mxu0 %v32
    %72 = vmatprep.subr.mxu0 0.0
    %73 = vmatpush1.msra.mxu0 %v31
    %74 = vmatprep.subr.mxu0 0.0
    %75 = vmatpush1.msra.mxu0 %v30
    %76 = vmatprep.subr.mxu0 0.0
    %77 = vmatpush2.msra.mxu0 0.0
    %78 = vmatprep.subr.mxu0 0.0
    %79 = vmatpush2.msra.mxu0 0.0
    %80 = vmatprep.subr.mxu0 0.0
    %81 = vmatpush2.msra.mxu0 0.0
    %82 = vmatprep.subr.mxu0 0.0
    %83 = vmatpush2.msra.mxu0 0.0
    %84 = vmatprep.subr.mxu0 0.0
    %85 = vmatpush2.msra.mxu0 0.0
    %86 = vmatprep.subr.mxu0 0.0
    %87 = vmatpush2.msra.mxu0 0.0
    %88 = vmatprep.subr.mxu0 0.0
    %89 = vmatpush2.msra.mxu0 0.0
    %90 = vmatprep.subr.mxu0 0.0
    %91 = vmatpush2.msra.mxu0 0.0
    %92 = vmatprep.subr.mxu0 0.0
    %93 = vmatpush2.msra.mxu0 0.0
    %94 = vmatprep.subr.mxu0 0.0
    %95 = vmatpush2.msra.mxu0 0.0
    %96 = vmatprep.subr.mxu0 0.0
    %97 = vmatpush2.msra.mxu0 0.0
    %98 = vmatprep.subr.mxu0 0.0
    %99 = vmatpush2.msra.mxu0 0.0
    %100 = vmatprep.subr.mxu0 0.0
    %101 = vmatpush2.msra.mxu0 0.0
    %102 = vmatprep.subr.mxu0 0.0
    %103 = vmatpush2.msra.mxu0 0.0
    %104 = vmatprep.subr.mxu0 0.0
    %105 = vmatpush2.msra.mxu0 0.0
    %106 = vmatprep.subr.mxu0 0.0
    %107 = vmatpush2.msra.mxu0 0.0
    %108 = vmatprep.mubr.f32.mxu0 0.0
    %109 = vmatmul.mubr.f32.gmra.mxu0 %v42
    %v110 = vpop.f32.mrf.mxu0
    %v111 = vadd.f32 %v38, %v110
    %v112 = vpop.f32.mrf.mxu0
    %113 = vdwg.mxu0
    %114 = vst [vmem:[#allocation5] sm:$0x3] %v111
    // Predicated region
    $region18: #{tpu_custom_call.1} parent=1 // pred_check
      _
    $region19: #{tpu_custom_call.1} parent=1 // pred_check_branch
      %116 = sbr.rel (0) target = $region21
    $region20: #{tpu_custom_call.1} parent=1 // pred_region
      %s118 = ssub.s32 32, 32
      %119 = vsyncadd [#allocation4], %s118
      %s121 = sshll.u32 [#allocation5], 4
      %s122 = int_to_ptr.vmem [resolvable:$true] %s121
      %124 = dma.vmem_to_hbm [thread:$0]  %s122, 32, %s3, [#allocation4]
    $region21: #{tpu_custom_call.1} parent=1 // pred_fallthru
      _
    // Predicated region
    $region22: #{tpu_custom_call.1} parent=1 // pred_check
      _
    $region23: #{tpu_custom_call.1} parent=1 // pred_check_branch
      %126 = sbr.rel (0) target = $region25
    $region24: #{tpu_custom_call.1} parent=1 // pred_region
      %127 = dma.done [#allocation4], 32
    $region25: #{tpu_custom_call.1} parent=1 // pred_fallthru
      _
    %128 = vsyncpa [#allocation3], 1
    %129 = vsyncpa [#allocation4], 1

</llo_original>
